<compile_context>
chip_gen: v5e
topology: v5e:2x2
jax: 0.10.0
libtpu: 0.0.40
codegen_flags: <defaults>
</compile_context>

<pallas_src>
import functools

import jax
import jax.numpy as jnp
from jax.experimental import pallas as pl
from jax.experimental.pallas import tpu as pltpu


def _cdiv(a, b):
    return (a + b - 1) // b


def _round_up(a, b):
    return _cdiv(a, b) * b


def _progressive_encoding_kernel(t_ref, x_ref, o_ref, *, d, n, feat, tau, inv_tau):
    """out = x * alpha(feature index).

    The block is a (tile_r, W) window of the row-major flattening of the original
    (N, F) array, so the feature index of element (r, c) is ((row0+r)*W + c) mod F.
    F and W are compile-time constants, so the mod lowers to cheap VPU integer ops
    (this kernel is HBM-bound; the VPU has huge slack).
    """
    tile_r, width = x_ref.shape
    t = t_ref[0].astype(jnp.float32)            # step counter from SMEM scalar prefetch

    row0 = pl.program_id(0) * tile_r
    r = jax.lax.broadcasted_iota(jnp.int32, (tile_r, width), 0)
    c = jax.lax.broadcasted_iota(jnp.int32, (tile_r, width), 1)
    # NOTE: int32 flat index -> valid below ~2^31 total elements (~8 GiB of f32).
    flat = (row0 + r) * width + c
    j = flat % feat                             # feature index in [0, F)

    k = j - d                                   # frequency index; first d cols are raw coords
    k = jnp.where(k >= n, k - n, k)             # undo the .repeat(2) tiling
    k = jnp.maximum(k, 0)

    # (t - tau*k)/tau, with the divide folded into a compile-time reciprocal
    # (1e-6-level fp difference vs the PyTorch op at clamp boundaries; not bit-exact).
    raw = (t - jnp.float32(tau) * k.astype(jnp.float32)) * jnp.float32(inv_tau)
    alpha = jnp.clip(raw, 0.0, 1.0)
    alpha = jnp.where(j < d, jnp.float32(1.0), alpha)

    o_ref[...] = (x_ref[...] * alpha).astype(o_ref.dtype)


def _pick_tile_rows(n_rows, width, itemsize, target_block_bytes=2 << 20):
    """Row tile sized by *physical* (lane-padded) VMEM bytes per row, rounded to the
    dtype sublane multiple.  ~2 MiB/block keeps (in+out) x double-buffer ~8 MiB,
    under the default scoped VMEM on v5e/v6e/v7x while sitting near the tiled-copy
    roofline knee."""
    sublane = {4: 8, 2: 16, 1: 32}.get(itemsize, 8)
    padded_row_bytes = _round_up(width, 128) * itemsize
    rows = max(sublane, (target_block_bytes // padded_row_bytes) // sublane * sublane)
    # Keep >= 2 grid blocks when there is enough work so v7x's 2 TCs both get rows.
    if n_rows > sublane:
        rows = min(rows, _round_up(_cdiv(n_rows, 2), sublane))
    rows = min(rows, _round_up(n_rows, sublane))
    return int(max(sublane, rows))


@functools.partial(
    jax.jit,
    static_argnames=("mapping_size", "T", "d", "apply_mask", "lane_width", "tile_rows"),
)
def progressive_encoding_forward(
    x, t_arr, *, mapping_size, T, d=3, apply_mask=True, lane_width=None, tile_rows=None
):
    """x: (N, d + 2*mapping_size); t_arr: int32[1] step counter (traced -> no retrace)."""
    N, F = x.shape
    n = mapping_size
    assert F == d + 2 * n, f"expected last dim {d + 2 * n}, got {F}"

    if not apply_mask:
        # alpha is all-ones -> exact identity; skip the kernel (and the HBM pass).
        return x

    tau = 2.0 * n / float(T)
    inv_tau = float(T) / (2.0 * n)

    # ---- layout: lane-dense (multiple-of-128) last dim when the row-major
    # flattening allows it at zero copy; otherwise fall back to full-F rows.
    total = N * F
    W = None
    if lane_width is not None:
        if lane_width % 128 == 0 and total % lane_width == 0:
            W = lane_width
    else:
        for cand in (1024, 512, 256, 128):
            if total % cand == 0:
                W = cand
                break
    if W is not None:
        xv = x.reshape(total // W, W)   # free: contiguous row-major reshape
    else:
        # TODO(synk): if the caller keeps x lane-padded (F -> round_up(F,128)) or
        # sized with N*F % 512 == 0, this masked-store fallback disappears.
        W = F
        xv = x
    R = xv.shape[0]

    if tile_rows is None:
        tile_rows = _pick_tile_rows(R, W, x.dtype.itemsize)

    kernel = functools.partial(
        _progressive_encoding_kernel, d=d, n=n, feat=F, tau=tau, inv_tau=inv_tau
    )

    out = pl.pallas_call(
        kernel,
        out_shape=jax.ShapeDtypeStruct((R, W), x.dtype),
        grid_spec=pltpu.PrefetchScalarGridSpec(
            num_scalar_prefetch=1,
            grid=(_cdiv(R, tile_rows),),
            in_specs=[pl.BlockSpec((tile_rows, W), lambda i, t_ref: (i, 0))],
            out_specs=pl.BlockSpec((tile_rows, W), lambda i, t_ref: (i, 0)),
        ),
        compiler_params=pltpu.CompilerParams(
            dimension_semantics=("parallel",),
        ),
        cost_estimate=pl.CostEstimate(
            flops=total,
            transcendentals=0,
            bytes_accessed=2 * total * x.dtype.itemsize,
        ),
    )(t_arr, xv)

    return out.reshape(N, F)


class ProgressiveEncoding:
    """Stateful wrapper mirroring the PyTorch module (host-side step counter)."""

    def __init__(self, mapping_size, T, d=3, apply=True):
        self._t = 0
        self.n = mapping_size
        self.T = T
        self.d = d
        self.apply = apply

    def __call__(self, x, lane_width=None, tile_rows=None):
        out = progressive_encoding_forward(
            x,
            jnp.array([self._t], dtype=jnp.int32),
            mapping_size=self.n,
            T=self.T,
            d=self.d,
            apply_mask=self.apply,
            lane_width=lane_width,
            tile_rows=tile_rows,
        )
        self._t += 1
        return out


def _reference(x, t, *, n, T, d, apply_mask):
    """Pure-JAX reference implementing the PyTorch semantics exactly."""
    tau = 2.0 * n / T
    idx = jnp.arange(n, dtype=jnp.float32)
    alpha = jnp.clip((t - tau * idx) / tau, 0.0, 1.0)
    alpha = jnp.tile(alpha, 2)
    if not apply_mask:
        alpha = jnp.ones_like(alpha)
    alpha = jnp.concatenate([jnp.ones((d,), jnp.float32), alpha], axis=0)
    return x * alpha


if __name__ == "__main__":
    ok = True
    mapping_size, T, d = 16, 10, 3
    F = d + 2 * mapping_size  # 35

    # --- case 1: small shape, fallback full-F-row path (280 elems), 4 steps ---
    x = jax.random.normal(jax.random.PRNGKey(0), (8, F), dtype=jnp.float32)
    pe = ProgressiveEncoding(mapping_size, T, d=d, apply=True)
    for _ in range(4):
        t_before = pe._t
        out = jax.block_until_ready(pe(x))
        ref = _reference(x, t_before, n=mapping_size, T=T, d=d, apply_mask=True)
        ok = ok and bool(jnp.allclose(out, ref, atol=1e-6, rtol=1e-6))

    # --- case 2: lane-dense path (512*35 = 17920 -> W=512, R=35, grid=2) ---
    x_ld = jax.random.normal(jax.random.PRNGKey(0), (512, F), dtype=jnp.float32)
    pe_ld = ProgressiveEncoding(mapping_size, T, d=d, apply=True)
    pe_ld._t = 7
    out_ld = jax.block_until_ready(pe_ld(x_ld))
    ref_ld = _reference(x_ld, 7, n=mapping_size, T=T, d=d, apply_mask=True)
    ok = ok and bool(jnp.allclose(out_ld, ref_ld, atol=1e-6, rtol=1e-6))

    # --- case 3: multi-block fallback path (64 rows, tile_rows=16 -> grid=4) ---
    x2 = jax.random.normal(jax.random.PRNGKey(0), (64, F), dtype=jnp.float32)
    pe2 = ProgressiveEncoding(mapping_size, T, d=d, apply=True)
    pe2._t = 5
    out2 = jax.block_until_ready(pe2(x2, tile_rows=16))
    ref2 = _reference(x2, 5, n=mapping_size, T=T, d=d, apply_mask=True)
    ok = ok and bool(jnp.allclose(out2, ref2, atol=1e-6, rtol=1e-6))

    # --- case 4: apply=False short-circuits to an exact identity ---
    pe_off = ProgressiveEncoding(mapping_size, T, d=d, apply=False)
    out_off = jax.block_until_ready(pe_off(x))
    ok = ok and bool(jnp.allclose(out_off, x, atol=1e-6, rtol=1e-6))

    if ok:
        print("KERNEL_OK")
    else:
        raise SystemExit("mismatch vs reference")
</pallas_src>

<mosaic_0001>
module attributes {stable_mosaic.version = 11 : i64} {
  func.func @_progressive_encoding_kernel(%arg0: i32, %arg1: memref<1xi32, #tpu.memory_space<smem>>, %arg2: memref<8x35xf32, #tpu.memory_space<vmem>>, %arg3: memref<8x35xf32, #tpu.memory_space<vmem>>) attributes {dimension_semantics = [#tpu.dimension_semantics<parallel>], iteration_bounds = array<i64: 1>, scalar_prefetch = 1 : i64, scratch_operands = 0 : i64, tpu.core_type = #tpu.core_type<tc>, window_params = [{transform_indices = @transform_0, window_bounds = array<i64: 8, 35>}, {transform_indices = @transform_1, window_bounds = array<i64: 8, 35>}]} {
    %c0 = arith.constant 0 : index
    %0 = memref.load %arg1[%c0] : memref<1xi32, #tpu.memory_space<smem>>
    %1 = arith.sitofp %0 : i32 to f32
    %c8_i32 = arith.constant 8 : i32
    %2 = arith.muli %arg0, %c8_i32 : i32
    %3 = tpu.iota {dimensions = array<i32: 0>} : vector<8x35xi32>
    %4 = tpu.iota {dimensions = array<i32: 1>} : vector<8x35xi32>
    %5 = vector.broadcast %2 : i32 to vector<8x35xi32>
    %6 = arith.addi %5, %3 : vector<8x35xi32>
    %c35_i32 = arith.constant 35 : i32
    %7 = vector.broadcast %c35_i32 : i32 to vector<8x35xi32>
    %8 = arith.muli %6, %7 : vector<8x35xi32>
    %9 = arith.addi %8, %4 : vector<8x35xi32>
    %c35_i32_0 = arith.constant 35 : i32
    %c0_i32 = arith.constant 0 : i32
    %10 = arith.cmpi eq, %c35_i32_0, %c0_i32 : i32
    %c1_i32 = arith.constant 1 : i32
    %11 = arith.select %10, %c1_i32, %c35_i32_0 : i32
    %12 = vector.broadcast %11 : i32 to vector<8x35xi32>
    %13 = arith.remsi %9, %12 : vector<8x35xi32>
    %c0_i32_1 = arith.constant 0 : i32
    %14 = vector.broadcast %c0_i32_1 : i32 to vector<8x35xi32>
    %15 = arith.cmpi ne, %13, %14 : vector<8x35xi32>
    %c0_i32_2 = arith.constant 0 : i32
    %16 = vector.broadcast %c0_i32_2 : i32 to vector<8x35xi32>
    %17 = arith.cmpi slt, %13, %16 : vector<8x35xi32>
    %c0_i32_3 = arith.constant 0 : i32
    %18 = arith.cmpi slt, %11, %c0_i32_3 : i32
    %19 = vector.broadcast %18 : i1 to vector<8x35xi1>
    %20 = vector.broadcast %19 : vector<8x35xi1> to vector<8x35xi1>
    %21 = arith.xori %17, %20 : vector<8x35xi1>
    %22 = arith.andi %21, %15 : vector<8x35xi1>
    %23 = vector.broadcast %11 : i32 to vector<8x35xi32>
    %24 = arith.addi %13, %23 : vector<8x35xi32>
    %25 = arith.select %22, %24, %13 : vector<8x35xi1>, vector<8x35xi32>
    %c3_i32 = arith.constant 3 : i32
    %26 = vector.broadcast %c3_i32 : i32 to vector<8x35xi32>
    %27 = arith.subi %25, %26 : vector<8x35xi32>
    %c16_i32 = arith.constant 16 : i32
    %28 = vector.broadcast %c16_i32 : i32 to vector<8x35xi32>
    %29 = arith.cmpi sge, %27, %28 : vector<8x35xi32>
    %c16_i32_4 = arith.constant 16 : i32
    %30 = vector.broadcast %c16_i32_4 : i32 to vector<8x35xi32>
    %31 = arith.subi %27, %30 : vector<8x35xi32>
    %32 = arith.select %29, %31, %27 : vector<8x35xi1>, vector<8x35xi32>
    %c0_i32_5 = arith.constant 0 : i32
    %33 = vector.broadcast %c0_i32_5 : i32 to vector<8x35xi32>
    %34 = arith.maxsi %32, %33 : vector<8x35xi32>
    %35 = arith.sitofp %34 : vector<8x35xi32> to vector<8x35xf32>
    %cst = arith.constant 3.200000e+00 : f32
    %36 = vector.broadcast %cst : f32 to vector<8x35xf32>
    %37 = arith.mulf %36, %35 : vector<8x35xf32>
    %38 = vector.broadcast %1 : f32 to vector<8x35xf32>
    %39 = arith.subf %38, %37 : vector<8x35xf32>
    %cst_6 = arith.constant 3.125000e-01 : f32
    %40 = vector.broadcast %cst_6 : f32 to vector<8x35xf32>
    %41 = arith.mulf %39, %40 : vector<8x35xf32>
    %cst_7 = arith.constant 0.000000e+00 : f32
    %cst_8 = arith.constant 1.000000e+00 : f32
    %42 = vector.broadcast %cst_7 : f32 to vector<8x35xf32>
    %43 = arith.maximumf %42, %41 : vector<8x35xf32>
    %44 = vector.broadcast %cst_8 : f32 to vector<8x35xf32>
    %45 = arith.minimumf %44, %43 : vector<8x35xf32>
    %c3_i32_9 = arith.constant 3 : i32
    %46 = vector.broadcast %c3_i32_9 : i32 to vector<8x35xi32>
    %47 = arith.cmpi slt, %25, %46 : vector<8x35xi32>
    %cst_10 = arith.constant 1.000000e+00 : f32
    %48 = vector.broadcast %cst_10 : f32 to vector<8x35xf32>
    %49 = arith.select %47, %48, %45 : vector<8x35xi1>, vector<8x35xf32>
    %c0_11 = arith.constant 0 : index
    %c0_12 = arith.constant 0 : index
    %50 = vector.load %arg2[%c0_11, %c0_12] : memref<8x35xf32, #tpu.memory_space<vmem>>, vector<8x35xf32>
    %51 = arith.mulf %50, %49 : vector<8x35xf32>
    %c0_13 = arith.constant 0 : index
    %c0_14 = arith.constant 0 : index
    %52 = vector.load %arg3[%c0_13, %c0_14] : memref<8x35xf32, #tpu.memory_space<vmem>>, vector<8x35xf32>
    tpu.vector_store %arg3[%c0_13, %c0_14], %51 {strides = array<i32>} : memref<8x35xf32, #tpu.memory_space<vmem>>, vector<8x35xf32>,
    return
  }
  func.func @transform_0(%arg0: i32, %arg1: memref<1xi32, #tpu.memory_space<smem>>) -> (i32, i32) {
    %c0_i32 = arith.constant 0 : i32
    %c0_i32_0 = arith.constant 0 : i32
    return %arg0, %c0_i32 : i32, i32
  }
  func.func @transform_1(%arg0: i32, %arg1: memref<1xi32, #tpu.memory_space<smem>>) -> (i32, i32) {
    %c0_i32 = arith.constant 0 : i32
    %c0_i32_0 = arith.constant 0 : i32
    return %arg0, %c0_i32 : i32, i32
  }
}

</mosaic_0001>

<llo_original>
// kernel: progressive_encoding_forward.1
$region0: #{progressive_encoding_forward.1}
  #allocation0 [shape = 'u32[]', space=smem, size = 0x4, offset = 0x4, fixed_abs, tag = 'smem constant byte address 0x4 - core index']
  #allocation1 [shape = 'u32[72,128]{1,0:T(1,128)}', space=vmem, size = 0x9000, scoped, tag = 'internal scratch']
  #allocation2 [shape = 's32[1]{0}', space=sflag, size = 0x4, scoped, tag = 'scoped memory for progressive_encoding_forward.1']
  #allocation3 [shape = 's32[1]{0:T(128)S(6)}', space=smem, size = 0x200, scoped, tag = 'prefetched SMEM operand 0']
  %s0 = inlined_call_operand.<no memory space> [shape: s32[1], index: 0, kind: input, shape index: {}]
  %s1 = inlined_call_operand.hbm [shape: f32[8,35], index: 1, kind: input, shape index: {}]
  %s2 = inlined_call_operand.hbm [shape: f32[8,35], index: 2, kind: output, shape index: {}]
  %s3 = sld [smem:[#allocation0]]
  $region18: #{progressive_encoding_forward.1} parent=0
    _
  %s5 = ssub.s32 1, %s3
  %s6 = scalar_select 0, %s5, %s3
  %7 = sst [smem:[#allocation3]] %s0
  $region1: #{progressive_encoding_forward.1} parent=0
    #allocation4 [shape = 'u8[4096]{0}', space=vmem, size = 0x1000, scoped, tag = 'input window, operand 1, single buffered']
    #allocation5 [shape = 's32[1]{0}', space=sflag, size = 0x4, scoped, tag = 'scoped memory for progressive_encoding_forward.1']
    #allocation6 [shape = 's32[1]{0}', space=sflag, size = 0x4, scoped, tag = 'scoped memory for progressive_encoding_forward.1']
    #allocation7 [shape = 'u8[4096]{0}', space=vmem, size = 0x1000, scoped, tag = 'output window, operand 0, single buffered']
    %8 = vsyncpa [#allocation5], 0
    %9 = vsyncpa [#allocation6], 0
    // Predicated region
    $region2: #{progressive_encoding_forward.1} parent=1 // pred_check
      _
    $region3: #{progressive_encoding_forward.1} parent=1 // pred_check_branch
      %11 = sbr.rel (0) target = $region5
    $region4: #{progressive_encoding_forward.1} parent=1 // pred_region
      %13 = vsyncadd [#allocation5], 0
      %s15 = sshll.u32 %s1, 4
      %s16 = int_to_ptr.hbm [resolvable:$true] %s15
      %s17 = sshll.u32 [#allocation4], 4
      %s18 = int_to_ptr.vmem [resolvable:$true] %s17
      %20 = dma.hbm_to_vmem [thread:$0]  %s16, 128, %s18, [#allocation5]
    $region5: #{progressive_encoding_forward.1} parent=1 // pred_fallthru
      _
    // Predicated region
    $region6: #{progressive_encoding_forward.1} parent=1 // pred_check
      _
    $region7: #{progressive_encoding_forward.1} parent=1 // pred_check_branch
      %22 = sbr.rel (0) target = $region9
    $region8: #{progressive_encoding_forward.1} parent=1 // pred_region
      %24 = dma.done [#allocation5], 128
    $region9: #{progressive_encoding_forward.1} parent=1 // pred_fallthru
      _
    %s25 = sld [smem:[#allocation3]]
    %s26 = scvt.s32.f32 %s25
    %s27 = smul.u32 0, 8
    %v28 = vlaneseq
    %v29 = vshrl.u32 %v28, 7
    %v30 = vlaneseq
    %v31 = vand.u32 %v30, 127
    %v32 = vstv %s27
    %v33 = vadd.s32 %v32, %v29
    %v34 = vmul.u32 %v33, 35
    %v35 = vadd.s32 %v34, %v31
    %vm36 = vcmp.lt.s32.totalorder %v35, 0
    %v37 = vsub.s32 0, %v35
    %v38 = vsel %vm36, %v37, %v35
    %v39 = vand.u32 %v38, 65535
    %v40 = vshrl.u32 %v38, 16
    %v42 = vmul.u32 %v39, 41194
    %v43 = vmul.u32 %v39, 59918
    %v44 = vmul.u32 %v40, 41194
    %v45 = vmul.u32 %v40, 59918
    %v46 = vshll.u32 %v43, 16
    %v47 = vshrl.u32 %v43, 16
    %v48 = vshll.u32 %v44, 16
    %v49 = vshrl.u32 %v44, 16
    %vm50 = vc.u32 %v42, %v46
    %v51 = vsel %vm50, 1, 0
    %v52 = vadd.s32 %v42, %v46
    %v53 = vadd.s32 %v45, %v51
    %vm54 = vc.u32 %v52, %v48
    %v55 = vsel %vm54, 1, 0
    %v56 = vadd.s32 %v52, %v48
    %v57 = vadd.s32 %v53, %v55
    %v58 = vadd.s32 %v57, %v47
    %v59 = vadd.s32 %v58, %v49
    %vm60 = vc.u32 %v56, 3926827242
    %v61 = vsel %vm60, 1, 0
    %v62 = vadd.s32 %v59, %v61
    %v63 = vshrl.u32 %v62, 5
    %v64 = vmul.u32 %v63, 35
    %v65 = vsub.s32 %v38, %v64
    %v66 = vsub.s32 0, %v65
    %v67 = vsel %vm36, %v66, %v65
    %vm68 = vcmp.ne.s32.totalorder %v67, 0
    %vm69 = vcmp.lt.s32.totalorder %v67, 0
    %vm70 = vmand %vm69, %vm68
    %v71 = vadd.s32 %v67, 35
    %v72 = vsel %vm70, %v71, %v67
    %v73 = vsub.s32 %v72, 3
    %vm74 = vcmp.ge.s32.totalorder %v73, 16
    %v75 = vsub.s32 %v73, 16
    %v76 = vsel %vm74, %v75, %v73
    %vm77 = vcmp.gt.s32.totalorder %v76, 0
    %v78 = vsel %vm77, %v76, 0
    %v79 = vcvt.s32.f32 %v78
    %v80 = vmul.f32 %v79, 3.2
    %v81 = vstv %s26
    %v82 = vsub.f32 %v81, %v80
    %v83 = vmul.f32 %v82, 0.3125
    %v84 = vmax.f32 %v83, 0.0
    %v85 = vmin.f32 %v84, 1.0
    %vm86 = vcmp.lt.s32.totalorder %v72, 3
    %v87 = vsel %vm86, 1.0, %v85
    %v88 = vld [vmem:[#allocation4] sm:$0xff]
    %v89 = vmul.f32 %v88, %v87
    %vm90 = vcmask 285696
    %91 = vst.msk [vmem:[#allocation7] sm:$0xff] %vm90, %v89
    // Predicated region
    $region10: #{progressive_encoding_forward.1} parent=1 // pred_check
      _
    $region11: #{progressive_encoding_forward.1} parent=1 // pred_check_branch
      %93 = sbr.rel (0) target = $region13
    $region12: #{progressive_encoding_forward.1} parent=1 // pred_region
      %95 = vsyncadd [#allocation6], 0
      %s97 = sshll.u32 [#allocation7], 4
      %s98 = int_to_ptr.vmem [resolvable:$true] %s97
      %s99 = sshll.u32 %s2, 4
      %s100 = int_to_ptr.hbm [resolvable:$true] %s99
      %102 = dma.vmem_to_hbm [thread:$0]  %s98, 128, %s100, [#allocation6]
    $region13: #{progressive_encoding_forward.1} parent=1 // pred_fallthru
      _
    // Predicated region
    $region14: #{progressive_encoding_forward.1} parent=1 // pred_check
      _
    $region15: #{progressive_encoding_forward.1} parent=1 // pred_check_branch
      %104 = sbr.rel (0) target = $region17
    $region16: #{progressive_encoding_forward.1} parent=1 // pred_region
      %106 = dma.done [#allocation6], 128
    $region17: #{progressive_encoding_forward.1} parent=1 // pred_fallthru
      _
    %107 = vsyncpa [#allocation5], 1
    %108 = vsyncpa [#allocation6], 1

</llo_original>
